<compile_context>
chip_gen: v7x
topology: tpu7x:2x2x1
jax: 0.10.0
libtpu: 0.0.40
codegen_flags: <defaults>
</compile_context>

<pallas_src>
from functools import partial

import jax
import jax.numpy as jnp
from jax.experimental import pallas as pl
from jax.experimental.pallas import tpu as pltpu

DIM = 3                 # state = (t, x1, x2)  -> dim - 1 = 2 spatial dims
D_MODEL = 32
NUM_HIDDEN_LAYERS = 4
BATCH = 8
BETA = 20.0             # nn.Softplus(beta=20)
INV_BETA = 1.0 / BETA
THRESHOLD = 20.0        # PyTorch Softplus default threshold

_N_LAYERS = NUM_HIDDEN_LAYERS + 1   # Linear layers per branch (5)
WIDTH = 128                         # fused, lane-dense hidden layer width
IN_W = 8                            # narrow HBM-facing input width (rows 3..7 zero)
OUT_W = 8                           # narrow HBM-facing output width (lanes 3..7 zero)
_USE_BF16_MXU = False               # True -> bf16 weights / MXU inputs (v6e/v7x)


def _round_up(x, m):
    return (x + m - 1) // m * m


def _softplus_beta(x):
    # PyTorch: softplus(x) = (1/beta) * log(1 + exp(beta*x)),
    # reverting to identity when beta*x > threshold.
    bx = BETA * x
    safe = jnp.minimum(bx, THRESHOLD)
    return jnp.where(bx > THRESHOLD, x, jnp.log1p(jnp.exp(safe)) * INV_BETA)


# --------------------------- fused Pallas kernel ---------------------------
def ncl_fused_kernel(state_ref, w0_ref, wm_ref, bm_ref, wl_ref, bl_ref, out_ref):
    """Block-diagonal fused MLP over one (TB, IN_W) batch tile.

    state_ref : (TB, IN_W)  f32   lanes >= DIM are zero
    w0_ref    : (IN_W, WIDTH)     first-layer weight (rows >= DIM are zero)
    wm_ref    : (NUM_HIDDEN_LAYERS-1, WIDTH, WIDTH) hidden-layer weights
    bm_ref    : (NUM_HIDDEN_LAYERS, 1, WIDTH)       biases of layers 0..3
    wl_ref    : (WIDTH, OUT_W)    output-layer weight
    bl_ref    : (1, OUT_W)        output-layer bias
    out_ref   : (TB, OUT_W) f32   real output in lanes [0, DIM)
    """
    cdt = w0_ref.dtype            # MXU input dtype (f32 default; bf16 optional)

    h = jnp.dot(state_ref[...].astype(cdt), w0_ref[...],
                preferred_element_type=jnp.float32) + bm_ref[0]
    h = _softplus_beta(h)

    for li in range(NUM_HIDDEN_LAYERS - 1):        # unrolled: LLO visibility
        h = jnp.dot(h.astype(cdt), wm_ref[li],
                    preferred_element_type=jnp.float32) + bm_ref[li + 1]
        h = _softplus_beta(h)

    out = jnp.dot(h.astype(cdt), wl_ref[...],
                  preferred_element_type=jnp.float32) + bl_ref[...]
    out_ref[...] = out.astype(out_ref.dtype)


# ------------------ parameter packing (block-diagonal fusion) ---------------
def pack_params(z_params, o_params):
    """Pack both branches into 5 small tensors of a WIDTH-wide fused MLP.

    Hidden lane layout: [0, D_MODEL)          -> F_zero branch
                        [D_MODEL, 2*D_MODEL)  -> F_other branch
                        [2*D_MODEL, WIDTH)    -> zero pad
    Output lanes: f0 -> lane 0, F_other -> lanes [1, DIM), lanes >= DIM zero.
    Call ONCE and reuse; keep out of the per-forward hot path.
    """
    w_dtype = jnp.bfloat16 if _USE_BF16_MXU else jnp.float32

    # layer 0: F_zero uses full (t, x) -> rows [0, DIM); F_other uses x only.
    wz0, bz0 = z_params[0]
    wo0, bo0 = o_params[0]
    w0 = jnp.zeros((IN_W, WIDTH), jnp.float32)
    w0 = w0.at[:DIM, :D_MODEL].set(wz0)
    w0 = w0.at[1:DIM, D_MODEL:2 * D_MODEL].set(wo0)
    b0 = jnp.zeros((1, WIDTH), jnp.float32)
    b0 = b0.at[:, :D_MODEL].set(bz0).at[:, D_MODEL:2 * D_MODEL].set(bo0)

    w_mid, b_mid = [], [b0]
    for li in range(1, _N_LAYERS - 1):
        wz, bz = z_params[li]
        wo, bo = o_params[li]
        w = jnp.zeros((WIDTH, WIDTH), jnp.float32)
        w = w.at[:D_MODEL, :D_MODEL].set(wz)
        w = w.at[D_MODEL:2 * D_MODEL, D_MODEL:2 * D_MODEL].set(wo)
        b = jnp.zeros((1, WIDTH), jnp.float32)
        b = b.at[:, :D_MODEL].set(bz).at[:, D_MODEL:2 * D_MODEL].set(bo)
        w_mid.append(w)
        b_mid.append(b)

    # output layer: F_zero -> lane 0, F_other -> lanes [1, DIM)
    wzl, bzl = z_params[-1]
    wol, bol = o_params[-1]
    w_last = jnp.zeros((WIDTH, OUT_W), jnp.float32)
    w_last = w_last.at[:D_MODEL, 0:1].set(wzl)
    w_last = w_last.at[D_MODEL:2 * D_MODEL, 1:DIM].set(wol)
    b_last = jnp.zeros((1, OUT_W), jnp.float32)
    b_last = b_last.at[:, 0:1].set(bzl).at[:, 1:DIM].set(bol)

    return (w0.astype(w_dtype),
            jnp.stack(w_mid, 0).astype(w_dtype),    # (3, 128, 128)
            jnp.stack(b_mid, 0),                    # (4, 1, 128) f32
            w_last.astype(w_dtype),                 # (128, 8)
            b_last)                                 # (1, 8)    f32


# --------------------------------- wrapper ----------------------------------
@partial(jax.jit, static_argnames=("tb", "b_pad"))
def _ncl_forward_padded(state, w0, w_mid, b_mid, w_last, b_last, *, tb, b_pad):
    B = state.shape[0]
    # Narrow, zero-padded input (B_pad, 8): ~16x less HBM than a 128-lane slab.
    state_p = jnp.zeros((b_pad, IN_W), jnp.float32)
    state_p = state_p.at[:B, :DIM].set(state.astype(jnp.float32))

    vmem_limit = int(min(64 * 1024 * 1024,
                         max(32 * 1024 * 1024, 8 * tb * WIDTH * 4)))

    out = pl.pallas_call(
        ncl_fused_kernel,
        out_shape=jax.ShapeDtypeStruct((b_pad, OUT_W), jnp.float32),
        grid=(b_pad // tb,),
        in_specs=[
            pl.BlockSpec((tb, IN_W), lambda i: (i, 0)),                     # state tile
            pl.BlockSpec((IN_W, WIDTH), lambda i: (0, 0)),                  # W0 (resident)
            pl.BlockSpec((NUM_HIDDEN_LAYERS - 1, WIDTH, WIDTH),
                         lambda i: (0, 0, 0)),                              # hidden Ws
            pl.BlockSpec((NUM_HIDDEN_LAYERS, 1, WIDTH),
                         lambda i: (0, 0, 0)),                              # hidden biases
            pl.BlockSpec((WIDTH, OUT_W), lambda i: (0, 0)),                 # W_last
            pl.BlockSpec((1, OUT_W), lambda i: (0, 0)),                     # b_last
        ],
        out_specs=pl.BlockSpec((tb, OUT_W), lambda i: (i, 0)),
        compiler_params=pltpu.CompilerParams(
            dimension_semantics=("parallel",),
            vmem_limit_bytes=vmem_limit),
    )(state_p, w0, w_mid, b_mid, w_last, b_last)

    return out[:B, :DIM]


def neural_conservation_law(state, packed_params, *, tile_b=1024):
    """F = concat([F_zero(x, t), F_other(x)], axis=-1); handles 1-D inputs."""
    squeeze = state.ndim == 1
    if squeeze:
        state = state[None, :]
    B = state.shape[0]

    # Batch tile: large enough to amortize per-step overhead, capped so that
    # mid/large batches still produce >= 2 grid steps (v7x has 2 TensorCores).
    tb = min(tile_b, _round_up(B, 8))
    if B >= 512:
        tb = min(tb, _round_up(-(-B // 2), 8))
    tb = max(tb, 8)
    b_pad = _round_up(B, tb)

    out = _ncl_forward_padded(state, *packed_params, tb=tb, b_pad=b_pad)
    return out[0] if squeeze else out


# ---------------- deterministic parameter construction ----------------
def _init_linear(key, fan_in, fan_out):
    kw, kb = jax.random.split(key)
    bound = 1.0 / jnp.sqrt(jnp.float32(fan_in))
    w = jax.random.uniform(kw, (fan_in, fan_out), jnp.float32, -bound, bound)
    b = jax.random.uniform(kb, (1, fan_out), jnp.float32, -bound, bound)
    return w, b


def init_params(key):
    kz, ko = jax.random.split(key)

    # F_zero stand-in: DIM -> d_model -> ... -> 1
    z_dims = [DIM] + [D_MODEL] * NUM_HIDDEN_LAYERS + [1]
    z_keys = jax.random.split(kz, _N_LAYERS)
    z_params = [_init_linear(z_keys[i], z_dims[i], z_dims[i + 1])
                for i in range(_N_LAYERS)]

    # F_other: (dim-1) -> d_model -> ... -> d_model -> (dim-1)
    o_dims = [DIM - 1] + [D_MODEL] * NUM_HIDDEN_LAYERS + [DIM - 1]
    o_keys = jax.random.split(ko, _N_LAYERS)
    o_params = [_init_linear(o_keys[i], o_dims[i], o_dims[i + 1])
                for i in range(_N_LAYERS)]

    return z_params, o_params


# ---------------- pure-JAX reference (unfused) for correctness check --------
def ref_forward(state, z_params, o_params):
    h = state
    for i, (w, b) in enumerate(z_params):
        h = h @ w + b
        if i < len(z_params) - 1:
            h = _softplus_beta(h)
    g = state[:, 1:]
    for i, (w, b) in enumerate(o_params):
        g = g @ w + b
        if i < len(o_params) - 1:
            g = _softplus_beta(g)
    return jnp.concatenate([h, g], axis=-1)


if __name__ == "__main__":
    key = jax.random.PRNGKey(0)
    k_state, k_params = jax.random.split(key)

    state = jax.random.normal(k_state, (BATCH, DIM), jnp.float32)
    z_params, o_params = init_params(k_params)

    # Pack once (hoisted out of the forward hot path).
    packed = jax.block_until_ready(pack_params(z_params, o_params))

    out = neural_conservation_law(state, packed)
    out = jax.block_until_ready(out)

    ref = ref_forward(state, z_params, o_params)
    assert out.shape == (BATCH, DIM), out.shape
    assert jnp.allclose(out, ref, atol=1e-3, rtol=1e-3), (
        "kernel/reference mismatch: max abs err = %e"
        % float(jnp.max(jnp.abs(out - ref))))

    # 1-D state path (matches the PyTorch forward's ndim==1 branch)
    out1 = jax.block_until_ready(
        neural_conservation_law(state[0], packed))
    assert out1.shape == (DIM,), out1.shape
    assert jnp.allclose(out1, ref[0], atol=1e-3, rtol=1e-3)

    print("KERNEL_OK")
</pallas_src>

<mosaic_0001>
module attributes {stable_mosaic.version = 11 : i64} {
  func.func @ncl_fused_kernel(%arg0: i32, %arg1: memref<8x8xf32, #tpu.memory_space<vmem>>, %arg2: memref<8x128xf32, #tpu.memory_space<vmem>>, %arg3: memref<3x128x128xf32, #tpu.memory_space<vmem>>, %arg4: memref<4x1x128xf32, #tpu.memory_space<vmem>>, %arg5: memref<128x8xf32, #tpu.memory_space<vmem>>, %arg6: memref<1x8xf32, #tpu.memory_space<vmem>>, %arg7: memref<8x8xf32, #tpu.memory_space<vmem>>) attributes {dimension_semantics = [#tpu.dimension_semantics<parallel>], iteration_bounds = array<i64: 1>, scalar_prefetch = 0 : i64, scratch_operands = 0 : i64, tpu.core_type = #tpu.core_type<tc>, window_params = [{transform_indices = @transform_0, window_bounds = array<i64: 8, 8>}, {pipeline_mode = #tpu.pipeline_mode<synchronous>, transform_indices = @transform_1, window_bounds = array<i64: 8, 128>}, {pipeline_mode = #tpu.pipeline_mode<synchronous>, transform_indices = @transform_2, window_bounds = array<i64: 3, 128, 128>}, {pipeline_mode = #tpu.pipeline_mode<synchronous>, transform_indices = @transform_3, window_bounds = array<i64: 4, 1, 128>}, {pipeline_mode = #tpu.pipeline_mode<synchronous>, transform_indices = @transform_4, window_bounds = array<i64: 128, 8>}, {pipeline_mode = #tpu.pipeline_mode<synchronous>, transform_indices = @transform_5, window_bounds = array<i64: 1, 8>}, {transform_indices = @transform_6, window_bounds = array<i64: 8, 8>}]} {
    %c0 = arith.constant 0 : index
    %c0_0 = arith.constant 0 : index
    %0 = vector.load %arg1[%c0, %c0_0] : memref<8x8xf32, #tpu.memory_space<vmem>>, vector<8x8xf32>
    %c0_1 = arith.constant 0 : index
    %c0_2 = arith.constant 0 : index
    %1 = vector.load %arg2[%c0_1, %c0_2] : memref<8x128xf32, #tpu.memory_space<vmem>>, vector<8x128xf32>
    %cst = arith.constant dense<0.000000e+00> : vector<8x128xf32>
    %2 = tpu.matmul %0, %1, %cst {dimension_numbers = #tpu.dot_dimension_numbers<[1], [0], [0], [1], [0, 0, 1, 1], [], []>} : vector<8x8xf32>, vector<8x128xf32>, vector<8x128xf32> -> vector<8x128xf32>
    %c0_3 = arith.constant 0 : index
    %c0_4 = arith.constant 0 : index
    %c0_5 = arith.constant 0 : index
    %3 = vector.load %arg4[%c0_3, %c0_4, %c0_5] : memref<4x1x128xf32, #tpu.memory_space<vmem>>, vector<1x1x128xf32>
    %4 = vector.shape_cast %3 : vector<1x1x128xf32> to vector<1x128xf32>
    %5 = vector.broadcast %4 : vector<1x128xf32> to vector<8x128xf32>
    %6 = arith.addf %2, %5 : vector<8x128xf32>
    %cst_6 = arith.constant 2.000000e+01 : f32
    %7 = vector.broadcast %cst_6 : f32 to vector<8x128xf32>
    %8 = arith.mulf %7, %6 : vector<8x128xf32>
    %cst_7 = arith.constant 2.000000e+01 : f32
    %9 = vector.broadcast %cst_7 : f32 to vector<8x128xf32>
    %10 = arith.minimumf %8, %9 : vector<8x128xf32>
    %cst_8 = arith.constant 2.000000e+01 : f32
    %11 = vector.broadcast %cst_8 : f32 to vector<8x128xf32>
    %12 = arith.cmpf ogt, %8, %11 : vector<8x128xf32>
    %13 = math.exp %10 : vector<8x128xf32>
    %14 = math.log1p %13 : vector<8x128xf32>
    %cst_9 = arith.constant 5.000000e-02 : f32
    %15 = vector.broadcast %cst_9 : f32 to vector<8x128xf32>
    %16 = arith.mulf %14, %15 : vector<8x128xf32>
    %17 = arith.select %12, %6, %16 : vector<8x128xi1>, vector<8x128xf32>
    %c0_10 = arith.constant 0 : index
    %c0_11 = arith.constant 0 : index
    %c0_12 = arith.constant 0 : index
    %18 = vector.load %arg3[%c0_10, %c0_11, %c0_12] : memref<3x128x128xf32, #tpu.memory_space<vmem>>, vector<1x128x128xf32>
    %19 = vector.shape_cast %18 : vector<1x128x128xf32> to vector<128x128xf32>
    %cst_13 = arith.constant dense<0.000000e+00> : vector<8x128xf32>
    %20 = tpu.matmul %17, %19, %cst_13 {dimension_numbers = #tpu.dot_dimension_numbers<[1], [0], [0], [1], [0, 0, 1, 1], [], []>} : vector<8x128xf32>, vector<128x128xf32>, vector<8x128xf32> -> vector<8x128xf32>
    %c1 = arith.constant 1 : index
    %c0_14 = arith.constant 0 : index
    %c0_15 = arith.constant 0 : index
    %21 = vector.load %arg4[%c1, %c0_14, %c0_15] : memref<4x1x128xf32, #tpu.memory_space<vmem>>, vector<1x1x128xf32>
    %22 = vector.shape_cast %21 : vector<1x1x128xf32> to vector<1x128xf32>
    %23 = vector.broadcast %22 : vector<1x128xf32> to vector<8x128xf32>
    %24 = arith.addf %20, %23 : vector<8x128xf32>
    %cst_16 = arith.constant 2.000000e+01 : f32
    %25 = vector.broadcast %cst_16 : f32 to vector<8x128xf32>
    %26 = arith.mulf %25, %24 : vector<8x128xf32>
    %cst_17 = arith.constant 2.000000e+01 : f32
    %27 = vector.broadcast %cst_17 : f32 to vector<8x128xf32>
    %28 = arith.minimumf %26, %27 : vector<8x128xf32>
    %cst_18 = arith.constant 2.000000e+01 : f32
    %29 = vector.broadcast %cst_18 : f32 to vector<8x128xf32>
    %30 = arith.cmpf ogt, %26, %29 : vector<8x128xf32>
    %31 = math.exp %28 : vector<8x128xf32>
    %32 = math.log1p %31 : vector<8x128xf32>
    %cst_19 = arith.constant 5.000000e-02 : f32
    %33 = vector.broadcast %cst_19 : f32 to vector<8x128xf32>
    %34 = arith.mulf %32, %33 : vector<8x128xf32>
    %35 = arith.select %30, %24, %34 : vector<8x128xi1>, vector<8x128xf32>
    %c1_20 = arith.constant 1 : index
    %c0_21 = arith.constant 0 : index
    %c0_22 = arith.constant 0 : index
    %36 = vector.load %arg3[%c1_20, %c0_21, %c0_22] : memref<3x128x128xf32, #tpu.memory_space<vmem>>, vector<1x128x128xf32>
    %37 = vector.shape_cast %36 : vector<1x128x128xf32> to vector<128x128xf32>
    %cst_23 = arith.constant dense<0.000000e+00> : vector<8x128xf32>
    %38 = tpu.matmul %35, %37, %cst_23 {dimension_numbers = #tpu.dot_dimension_numbers<[1], [0], [0], [1], [0, 0, 1, 1], [], []>} : vector<8x128xf32>, vector<128x128xf32>, vector<8x128xf32> -> vector<8x128xf32>
    %c2 = arith.constant 2 : index
    %c0_24 = arith.constant 0 : index
    %c0_25 = arith.constant 0 : index
    %39 = vector.load %arg4[%c2, %c0_24, %c0_25] : memref<4x1x128xf32, #tpu.memory_space<vmem>>, vector<1x1x128xf32>
    %40 = vector.shape_cast %39 : vector<1x1x128xf32> to vector<1x128xf32>
    %41 = vector.broadcast %40 : vector<1x128xf32> to vector<8x128xf32>
    %42 = arith.addf %38, %41 : vector<8x128xf32>
    %cst_26 = arith.constant 2.000000e+01 : f32
    %43 = vector.broadcast %cst_26 : f32 to vector<8x128xf32>
    %44 = arith.mulf %43, %42 : vector<8x128xf32>
    %cst_27 = arith.constant 2.000000e+01 : f32
    %45 = vector.broadcast %cst_27 : f32 to vector<8x128xf32>
    %46 = arith.minimumf %44, %45 : vector<8x128xf32>
    %cst_28 = arith.constant 2.000000e+01 : f32
    %47 = vector.broadcast %cst_28 : f32 to vector<8x128xf32>
    %48 = arith.cmpf ogt, %44, %47 : vector<8x128xf32>
    %49 = math.exp %46 : vector<8x128xf32>
    %50 = math.log1p %49 : vector<8x128xf32>
    %cst_29 = arith.constant 5.000000e-02 : f32
    %51 = vector.broadcast %cst_29 : f32 to vector<8x128xf32>
    %52 = arith.mulf %50, %51 : vector<8x128xf32>
    %53 = arith.select %48, %42, %52 : vector<8x128xi1>, vector<8x128xf32>
    %c2_30 = arith.constant 2 : index
    %c0_31 = arith.constant 0 : index
    %c0_32 = arith.constant 0 : index
    %54 = vector.load %arg3[%c2_30, %c0_31, %c0_32] : memref<3x128x128xf32, #tpu.memory_space<vmem>>, vector<1x128x128xf32>
    %55 = vector.shape_cast %54 : vector<1x128x128xf32> to vector<128x128xf32>
    %cst_33 = arith.constant dense<0.000000e+00> : vector<8x128xf32>
    %56 = tpu.matmul %53, %55, %cst_33 {dimension_numbers = #tpu.dot_dimension_numbers<[1], [0], [0], [1], [0, 0, 1, 1], [], []>} : vector<8x128xf32>, vector<128x128xf32>, vector<8x128xf32> -> vector<8x128xf32>
    %c3 = arith.constant 3 : index
    %c0_34 = arith.constant 0 : index
    %c0_35 = arith.constant 0 : index
    %57 = vector.load %arg4[%c3, %c0_34, %c0_35] : memref<4x1x128xf32, #tpu.memory_space<vmem>>, vector<1x1x128xf32>
    %58 = vector.shape_cast %57 : vector<1x1x128xf32> to vector<1x128xf32>
    %59 = vector.broadcast %58 : vector<1x128xf32> to vector<8x128xf32>
    %60 = arith.addf %56, %59 : vector<8x128xf32>
    %cst_36 = arith.constant 2.000000e+01 : f32
    %61 = vector.broadcast %cst_36 : f32 to vector<8x128xf32>
    %62 = arith.mulf %61, %60 : vector<8x128xf32>
    %cst_37 = arith.constant 2.000000e+01 : f32
    %63 = vector.broadcast %cst_37 : f32 to vector<8x128xf32>
    %64 = arith.minimumf %62, %63 : vector<8x128xf32>
    %cst_38 = arith.constant 2.000000e+01 : f32
    %65 = vector.broadcast %cst_38 : f32 to vector<8x128xf32>
    %66 = arith.cmpf ogt, %62, %65 : vector<8x128xf32>
    %67 = math.exp %64 : vector<8x128xf32>
    %68 = math.log1p %67 : vector<8x128xf32>
    %cst_39 = arith.constant 5.000000e-02 : f32
    %69 = vector.broadcast %cst_39 : f32 to vector<8x128xf32>
    %70 = arith.mulf %68, %69 : vector<8x128xf32>
    %71 = arith.select %66, %60, %70 : vector<8x128xi1>, vector<8x128xf32>
    %c0_40 = arith.constant 0 : index
    %c0_41 = arith.constant 0 : index
    %72 = vector.load %arg5[%c0_40, %c0_41] : memref<128x8xf32, #tpu.memory_space<vmem>>, vector<128x8xf32>
    %cst_42 = arith.constant dense<0.000000e+00> : vector<8x8xf32>
    %73 = tpu.matmul %71, %72, %cst_42 {dimension_numbers = #tpu.dot_dimension_numbers<[1], [0], [0], [1], [0, 0, 1, 1], [], []>} : vector<8x128xf32>, vector<128x8xf32>, vector<8x8xf32> -> vector<8x8xf32>
    %c0_43 = arith.constant 0 : index
    %c0_44 = arith.constant 0 : index
    %74 = vector.load %arg6[%c0_43, %c0_44] : memref<1x8xf32, #tpu.memory_space<vmem>>, vector<1x8xf32>
    %75 = vector.broadcast %74 : vector<1x8xf32> to vector<8x8xf32>
    %76 = arith.addf %73, %75 : vector<8x8xf32>
    %c0_45 = arith.constant 0 : index
    %c0_46 = arith.constant 0 : index
    %77 = vector.load %arg7[%c0_45, %c0_46] : memref<8x8xf32, #tpu.memory_space<vmem>>, vector<8x8xf32>
    tpu.vector_store %arg7[%c0_45, %c0_46], %76 {strides = array<i32>} : memref<8x8xf32, #tpu.memory_space<vmem>>, vector<8x8xf32>,
    return
  }
  func.func @transform_0(%arg0: i32) -> (i32, i32) {
    %c0_i32 = arith.constant 0 : i32
    %c0_i32_0 = arith.constant 0 : i32
    return %arg0, %c0_i32 : i32, i32
  }
  func.func @transform_1(%arg0: i32) -> (i32, i32) {
    %c0_i32 = arith.constant 0 : i32
    %c0_i32_0 = arith.constant 0 : i32
    %c0_i32_1 = arith.constant 0 : i32
    return %c0_i32, %c0_i32_0 : i32, i32
  }
  func.func @transform_2(%arg0: i32) -> (i32, i32, i32) {
    %c0_i32 = arith.constant 0 : i32
    %c0_i32_0 = arith.constant 0 : i32
    %c0_i32_1 = arith.constant 0 : i32
    %c0_i32_2 = arith.constant 0 : i32
    return %c0_i32, %c0_i32_0, %c0_i32_1 : i32, i32, i32
  }
  func.func @transform_3(%arg0: i32) -> (i32, i32, i32) {
    %c0_i32 = arith.constant 0 : i32
    %c0_i32_0 = arith.constant 0 : i32
    %c0_i32_1 = arith.constant 0 : i32
    %c0_i32_2 = arith.constant 0 : i32
    return %c0_i32, %c0_i32_0, %c0_i32_1 : i32, i32, i32
  }
  func.func @transform_4(%arg0: i32) -> (i32, i32) {
    %c0_i32 = arith.constant 0 : i32
    %c0_i32_0 = arith.constant 0 : i32
    %c0_i32_1 = arith.constant 0 : i32
    return %c0_i32, %c0_i32_0 : i32, i32
  }
  func.func @transform_5(%arg0: i32) -> (i32, i32) {
    %c0_i32 = arith.constant 0 : i32
    %c0_i32_0 = arith.constant 0 : i32
    %c0_i32_1 = arith.constant 0 : i32
    return %c0_i32, %c0_i32_0 : i32, i32
  }
  func.func @transform_6(%arg0: i32) -> (i32, i32) {
    %c0_i32 = arith.constant 0 : i32
    %c0_i32_0 = arith.constant 0 : i32
    return %arg0, %c0_i32 : i32, i32
  }
}

</mosaic_0001>

<llo_original>
// kernel: _ncl_forward_padded.1
$region0: #{_ncl_forward_padded.1}
  #allocation0 [shape = 'u32[]', space=smem, size = 0x4, offset = 0x4, fixed_abs, tag = 'smem constant byte address 0x4 - core index']
  #allocation1 [shape = 'u32[144,128]{1,0:T(1,128)}', space=vmem, size = 0x12000, scoped, tag = 'internal scratch']
  %s0 = inlined_call_operand.vmem [shape: f32[8,8], index: 0, kind: input, shape index: {}]
  %s1 = inlined_call_operand.vmem [shape: f32[8,128], index: 1, kind: input, shape index: {}]
  %s2 = inlined_call_operand.hbm [shape: f32[3,128,128], index: 2, kind: input, shape index: {}]
  %s3 = inlined_call_operand.vmem [shape: f32[4,1,128], index: 3, kind: input, shape index: {}]
  %s4 = inlined_call_operand.vmem [shape: f32[128,8], index: 4, kind: input, shape index: {}]
  %s5 = inlined_call_operand.vmem [shape: f32[1,8], index: 5, kind: input, shape index: {}]
  %s6 = inlined_call_operand.vmem [shape: f32[8,8], index: 6, kind: output, shape index: {}]
  %s7 = sld [smem:[#allocation0]]
  $region38: #{_ncl_forward_padded.1} parent=0
    _
  %s9 = ssub.s32 1, %s7
  %s10 = scalar_select 0, %s9, %s7
  $region1: #{_ncl_forward_padded.1} parent=0
    #allocation2 [shape = 'u8[196608]{0}', space=vmem, size = 0x30000, scoped, tag = 'input window, operand 2, single buffered']
    #allocation3 [shape = 's32[1]{0}', space=sflag, size = 0x4, scoped, tag = 'scoped memory for _ncl_forward_padded.1']
    %11 = vsyncpa [#allocation3], 0
    // Predicated region
    $region2: #{_ncl_forward_padded.1} parent=1 // pred_check
      _
    $region3: #{_ncl_forward_padded.1} parent=1 // pred_check_branch
      %13 = sbr.rel (0) target = $region5
    $region4: #{_ncl_forward_padded.1} parent=1 // pred_region
      _
    $region5: #{_ncl_forward_padded.1} parent=1 // pred_fallthru
      _
    // Predicated region
    $region6: #{_ncl_forward_padded.1} parent=1 // pred_check
      _
    $region7: #{_ncl_forward_padded.1} parent=1 // pred_check_branch
      %15 = sbr.rel (0) target = $region9
    $region8: #{_ncl_forward_padded.1} parent=1 // pred_region
      _
    $region9: #{_ncl_forward_padded.1} parent=1 // pred_fallthru
      _
    // Predicated region
    $region10: #{_ncl_forward_padded.1} parent=1 // pred_check
      _
    $region11: #{_ncl_forward_padded.1} parent=1 // pred_check_branch
      %17 = sbr.rel (0) target = $region13
    $region12: #{_ncl_forward_padded.1} parent=1 // pred_region
      %s19 = ssub.s32 6144, 6144
      %20 = vsyncadd [#allocation3], %s19
      %s21 = sshll.u32 [#allocation2], 4
      %s22 = int_to_ptr.vmem [resolvable:$true] %s21
      %27 = dma.hbm_to_vmem [thread:$0]  %s2, 6144, %s22, [#allocation3], 128, 128, 8
    $region13: #{_ncl_forward_padded.1} parent=1 // pred_fallthru
      _
    // Predicated region
    $region14: #{_ncl_forward_padded.1} parent=1 // pred_check
      _
    $region15: #{_ncl_forward_padded.1} parent=1 // pred_check_branch
      %29 = sbr.rel (0) target = $region17
    $region16: #{_ncl_forward_padded.1} parent=1 // pred_region
      _
    $region17: #{_ncl_forward_padded.1} parent=1 // pred_fallthru
      _
    // Predicated region
    $region18: #{_ncl_forward_padded.1} parent=1 // pred_check
      _
    $region19: #{_ncl_forward_padded.1} parent=1 // pred_check_branch
      %31 = sbr.rel (0) target = $region21
    $region20: #{_ncl_forward_padded.1} parent=1 // pred_region
      _
    $region21: #{_ncl_forward_padded.1} parent=1 // pred_fallthru
      _
    // Predicated region
    $region22: #{_ncl_forward_padded.1} parent=1 // pred_check
      _
    $region23: #{_ncl_forward_padded.1} parent=1 // pred_check_branch
      %33 = sbr.rel (0) target = $region25
    $region24: #{_ncl_forward_padded.1} parent=1 // pred_region
      _
    $region25: #{_ncl_forward_padded.1} parent=1 // pred_fallthru
      _
    // Predicated region
    $region26: #{_ncl_forward_padded.1} parent=1 // pred_check
      _
    $region27: #{_ncl_forward_padded.1} parent=1 // pred_check_branch
      %35 = sbr.rel (0) target = $region29
    $region28: #{_ncl_forward_padded.1} parent=1 // pred_region
      %36 = dma.done [#allocation3], 6144
    $region29: #{_ncl_forward_padded.1} parent=1 // pred_fallthru
      _
    %v37 = vld [vmem:[%s0] sm:$0xff]
    %v38 = vld [vmem:[%s1] sm:$0xff]
    %v39 = vld [vmem:[%s3] sm:$0x1]
    %v41 = vlaneseq
    %v42 = vshrl.u32 %v41, 7
    %v43 = vsub.s32 0, %v42
    %v44 = vrot.slane %v39, %v43
    %vm46 = vcmask 64512
    %v48 = vsel %vm46, %v37, 0
    %50 = vmatprep.subr.mxu0 0.0
    %51 = vmatpush1.msra.mxu0 %v38
    %52 = vmatprep.subr.mxu0 0.0
    %53 = vmatpush1.msra.mxu0 0.0
    %54 = vmatprep.subr.mxu0 0.0
    %55 = vmatpush1.msra.mxu0 0.0
    %56 = vmatprep.subr.mxu0 0.0
    %57 = vmatpush1.msra.mxu0 0.0
    %58 = vmatprep.subr.mxu0 0.0
    %59 = vmatpush1.msra.mxu0 0.0
    %60 = vmatprep.subr.mxu0 0.0
    %61 = vmatpush1.msra.mxu0 0.0
    %62 = vmatprep.subr.mxu0 0.0
    %63 = vmatpush1.msra.mxu0 0.0
    %64 = vmatprep.subr.mxu0 0.0
    %65 = vmatpush1.msra.mxu0 0.0
    %66 = vmatprep.subr.mxu0 0.0
    %67 = vmatpush1.msra.mxu0 0.0
    %68 = vmatprep.subr.mxu0 0.0
    %69 = vmatpush1.msra.mxu0 0.0
    %70 = vmatprep.subr.mxu0 0.0
    %71 = vmatpush1.msra.mxu0 0.0
    %72 = vmatprep.subr.mxu0 0.0
    %73 = vmatpush1.msra.mxu0 0.0
    %74 = vmatprep.subr.mxu0 0.0
    %75 = vmatpush1.msra.mxu0 0.0
    %76 = vmatprep.subr.mxu0 0.0
    %77 = vmatpush1.msra.mxu0 0.0
    %78 = vmatprep.subr.mxu0 0.0
    %79 = vmatpush1.msra.mxu0 0.0
    %80 = vmatprep.subr.mxu0 0.0
    %81 = vmatpush1.msra.mxu0 0.0
    %82 = vmatprep.subr.mxu0 0.0
    %83 = vmatpush1.msra.mxu0 0.0
    %84 = vmatprep.subr.mxu0 0.0
    %85 = vmatpush1.msra.mxu0 0.0
    %86 = vmatprep.subr.mxu0 0.0
    %87 = vmatpush1.msra.mxu0 0.0
    %88 = vmatprep.subr.mxu0 0.0
    %89 = vmatpush1.msra.mxu0 0.0
    %90 = vmatprep.subr.mxu0 0.0
    %91 = vmatpush1.msra.mxu0 0.0
    %92 = vmatprep.subr.mxu0 0.0
    %93 = vmatpush1.msra.mxu0 0.0
    %94 = vmatprep.subr.mxu0 0.0
    %95 = vmatpush1.msra.mxu0 0.0
    %96 = vmatprep.subr.mxu0 0.0
    %97 = vmatpush1.msra.mxu0 0.0
    %98 = vmatprep.subr.mxu0 0.0
    %99 = vmatpush1.msra.mxu0 0.0
    %100 = vmatprep.subr.mxu0 0.0
    %101 = vmatpush1.msra.mxu0 0.0
    %102 = vmatprep.subr.mxu0 0.0
    %103 = vmatpush1.msra.mxu0 0.0
    %104 = vmatprep.subr.mxu0 0.0
    %105 = vmatpush1.msra.mxu0 0.0
    %106 = vmatprep.subr.mxu0 0.0
    %107 = vmatpush1.msra.mxu0 0.0
    %108 = vmatprep.subr.mxu0 0.0
    %109 = vmatpush1.msra.mxu0 0.0
    %110 = vmatprep.subr.mxu0 0.0
    %111 = vmatpush1.msra.mxu0 0.0
    %112 = vmatprep.subr.mxu0 0.0
    %113 = vmatpush1.msra.mxu0 0.0
    %114 = vmatprep.mubr.f32.mxu0 0.0
    %115 = vmatmul.mubr.f32.gmra.mrb[0].mxu0 %v48
    %v116 = vpop.f32.mrb[0].mxu0
    %v117 = vadd.f32 %v44, %v116
    %v118 = vpop.f32.mrb[0].mxu0
    %119 = vdwg.mxu0
    %v120 = vmul.f32 %v117, 20.0
    %v121 = vmin.f32 %v120, 20.0
    %vm122 = vcmp.gt.f32.partialorder %v120, 20.0
    %v123 = vmul.f32 %v121, 1.442695
    %v124 = vpow.pop %v123
    %v125 = vadd.f32 %v124, 1.0
    %v126 = vlog2.pop %v125
    %v127 = vmul.f32 %v126, 0.6931472
    %v128 = vmul.f32 -0.5, %v124
    %v129 = vadd.f32 %v128, 1.0
    %v130 = vmul.f32 %v129, %v124
    %v131 = vand.u32 2147483647, %v124
    %vm132 = vcmp.lt.f32.partialorder %v131, 0.0004427343
    %v133 = vsel %vm132, %v130, %v127
    %v134 = vmul.f32 %v133, 0.05
    %v135 = vsel %vm122, %v117, %v134
    %v136 = vld [vmem:[#allocation2] sm:$0xff]
    %v137 = vld [vmem:[#allocation2 + $0x8] sm:$0xff]
    %v138 = vld [vmem:[#allocation2 + $0x10] sm:$0xff]
    %v139 = vld [vmem:[#allocation2 + $0x18] sm:$0xff]
    %v140 = vld [vmem:[#allocation2 + $0x20] sm:$0xff]
    %v141 = vld [vmem:[#allocation2 + $0x28] sm:$0xff]
    %v142 = vld [vmem:[#allocation2 + $0x30] sm:$0xff]
    %v143 = vld [vmem:[#allocation2 + $0x38] sm:$0xff]
    %v144 = vld [vmem:[#allocation2 + $0x40] sm:$0xff]
    %v145 = vld [vmem:[#allocation2 + $0x48] sm:$0xff]
    %v146 = vld [vmem:[#allocation2 + $0x50] sm:$0xff]
    %v147 = vld [vmem:[#allocation2 + $0x58] sm:$0xff]
    %v148 = vld [vmem:[#allocation2 + $0x60] sm:$0xff]
    %v149 = vld [vmem:[#allocation2 + $0x68] sm:$0xff]
    %v150 = vld [vmem:[#allocation2 + $0x70] sm:$0xff]
    %v151 = vld [vmem:[#allocation2 + $0x78] sm:$0xff]
    %s152 = scalar_lea.vmem %s3, 1
    %v153 = vld [vmem:[%s152] sm:$0x1]
    %v155 = vlaneseq
    %v156 = vshrl.u32 %v155, 7
    %v157 = vsub.s32 0, %v156
    %v158 = vrot.slane %v153, %v157
    %160 = vmatprep.subr.mxu0 0.0
    %161 = vmatpush1.msra.mxu0 %v136
    %162 = vmatprep.subr.mxu0 0.0
    %163 = vmatpush1.msra.mxu0 %v137
    %164 = vmatprep.subr.mxu0 0.0
    %165 = vmatpush1.msra.mxu0 %v138
    %166 = vmatprep.subr.mxu0 0.0
    %167 = vmatpush1.msra.mxu0 %v139
    %168 = vmatprep.subr.mxu0 0.0
    %169 = vmatpush1.msra.mxu0 %v140
    %170 = vmatprep.subr.mxu0 0.0
    %171 = vmatpush1.msra.mxu0 %v141
    %172 = vmatprep.subr.mxu0 0.0
    %173 = vmatpush1.msra.mxu0 %v142
    %174 = vmatprep.subr.mxu0 0.0
    %175 = vmatpush1.msra.mxu0 %v143
    %176 = vmatprep.subr.mxu0 0.0
    %177 = vmatpush1.msra.mxu0 %v144
    %178 = vmatprep.subr.mxu0 0.0
    %179 = vmatpush1.msra.mxu0 %v145
    %180 = vmatprep.subr.mxu0 0.0
    %181 = vmatpush1.msra.mxu0 %v146
    %182 = vmatprep.subr.mxu0 0.0
    %183 = vmatpush1.msra.mxu0 %v147
    %184 = vmatprep.subr.mxu0 0.0
    %185 = vmatpush1.msra.mxu0 %v148
    %186 = vmatprep.subr.mxu0 0.0
    %187 = vmatpush1.msra.mxu0 %v149
    %188 = vmatprep.subr.mxu0 0.0
    %189 = vmatpush1.msra.mxu0 %v150
    %190 = vmatprep.subr.mxu0 0.0
    %191 = vmatpush1.msra.mxu0 %v151
    %192 = vmatprep.subr.mxu0 0.0
    %193 = vmatpush1.msra.mxu0 0.0
    %194 = vmatprep.subr.mxu0 0.0
    %195 = vmatpush1.msra.mxu0 0.0
    %196 = vmatprep.subr.mxu0 0.0
    %197 = vmatpush1.msra.mxu0 0.0
    %198 = vmatprep.subr.mxu0 0.0
    %199 = vmatpush1.msra.mxu0 0.0
    %200 = vmatprep.subr.mxu0 0.0
    %201 = vmatpush1.msra.mxu0 0.0
    %202 = vmatprep.subr.mxu0 0.0
    %203 = vmatpush1.msra.mxu0 0.0
    %204 = vmatprep.subr.mxu0 0.0
    %205 = vmatpush1.msra.mxu0 0.0
    %206 = vmatprep.subr.mxu0 0.0
    %207 = vmatpush1.msra.mxu0 0.0
    %208 = vmatprep.subr.mxu0 0.0
    %209 = vmatpush1.msra.mxu0 0.0
    %210 = vmatprep.subr.mxu0 0.0
    %211 = vmatpush1.msra.mxu0 0.0
    %212 = vmatprep.subr.mxu0 0.0
    %213 = vmatpush1.msra.mxu0 0.0
    %214 = vmatprep.subr.mxu0 0.0
    %215 = vmatpush1.msra.mxu0 0.0
    %216 = vmatprep.subr.mxu0 0.0
    %217 = vmatpush1.msra.mxu0 0.0
    %218 = vmatprep.subr.mxu0 0.0
    %219 = vmatpush1.msra.mxu0 0.0
    %220 = vmatprep.subr.mxu0 0.0
    %221 = vmatpush1.msra.mxu0 0.0
    %222 = vmatprep.subr.mxu0 0.0
    %223 = vmatpush1.msra.mxu0 0.0
    %224 = vmatprep.mubr.f32.mxu0 0.0
    %225 = vmatmul.mubr.f32.gmra.mrb[0].mxu0 %v135
    %v226 = vpop.f32.mrb[0].mxu0
    %v227 = vadd.f32 %v158, %v226
    %v228 = vpop.f32.mrb[0].mxu0
    %229 = vdwg.mxu0
    %v230 = vmul.f32 %v227, 20.0
    %v231 = vmin.f32 %v230, 20.0
    %vm232 = vcmp.gt.f32.partialorder %v230, 20.0
    %v233 = vmul.f32 %v231, 1.442695
    %v234 = vpow.pop %v233
    %v235 = vadd.f32 %v234, 1.0
    %v236 = vlog2.pop %v235
    %v237 = vmul.f32 %v236, 0.6931472
    %v238 = vmul.f32 -0.5, %v234
    %v239 = vadd.f32 %v238, 1.0
    %v240 = vmul.f32 %v239, %v234
    %v241 = vand.u32 2147483647, %v234
    %vm242 = vcmp.lt.f32.partialorder %v241, 0.0004427343
    %v243 = vsel %vm242, %v240, %v237
    %v244 = vmul.f32 %v243, 0.05
    %v245 = vsel %vm232, %v227, %v244
    %s246 = scalar_lea.vmem [#allocation2], 128
    %v247 = vld [vmem:[%s246] sm:$0xff]
    %v248 = vld [vmem:[%s246 + $0x8] sm:$0xff]
    %v249 = vld [vmem:[%s246 + $0x10] sm:$0xff]
    %v250 = vld [vmem:[%s246 + $0x18] sm:$0xff]
    %v251 = vld [vmem:[%s246 + $0x20] sm:$0xff]
    %v252 = vld [vmem:[%s246 + $0x28] sm:$0xff]
    %v253 = vld [vmem:[%s246 + $0x30] sm:$0xff]
    %v254 = vld [vmem:[%s246 + $0x38] sm:$0xff]
    %v255 = vld [vmem:[%s246 + $0x40] sm:$0xff]
    %v256 = vld [vmem:[%s246 + $0x48] sm:$0xff]
    %v257 = vld [vmem:[%s246 + $0x50] sm:$0xff]
    %v258 = vld [vmem:[%s246 + $0x58] sm:$0xff]
    %v259 = vld [vmem:[%s246 + $0x60] sm:$0xff]
    %v260 = vld [vmem:[%s246 + $0x68] sm:$0xff]
    %v261 = vld [vmem:[%s246 + $0x70] sm:$0xff]
    %v262 = vld [vmem:[%s246 + $0x78] sm:$0xff]
    %s263 = scalar_lea.vmem %s3, 2
    %v264 = vld [vmem:[%s263] sm:$0x1]
    %v266 = vlaneseq
    %v267 = vshrl.u32 %v266, 7
    %v268 = vsub.s32 0, %v267
    %v269 = vrot.slane %v264, %v268
    %271 = vmatprep.subr.mxu0 0.0
    %272 = vmatpush1.msra.mxu0 %v247
    %273 = vmatprep.subr.mxu0 0.0
    %274 = vmatpush1.msra.mxu0 %v248
    %275 = vmatprep.subr.mxu0 0.0
    %276 = vmatpush1.msra.mxu0 %v249
    %277 = vmatprep.subr.mxu0 0.0
    %278 = vmatpush1.msra.mxu0 %v250
    %279 = vmatprep.subr.mxu0 0.0
    %280 = vmatpush1.msra.mxu0 %v251
    %281 = vmatprep.subr.mxu0 0.0
    %282 = vmatpush1.msra.mxu0 %v252
    %283 = vmatprep.subr.mxu0 0.0
    %284 = vmatpush1.msra.mxu0 %v253
    %285 = vmatprep.subr.mxu0 0.0
    %286 = vmatpush1.msra.mxu0 %v254
    %287 = vmatprep.subr.mxu0 0.0
    %288 = vmatpush1.msra.mxu0 %v255
    %289 = vmatprep.subr.mxu0 0.0
    %290 = vmatpush1.msra.mxu0 %v256
    %291 = vmatprep.subr.mxu0 0.0
    %292 = vmatpush1.msra.mxu0 %v257
    %293 = vmatprep.subr.mxu0 0.0
    %294 = vmatpush1.msra.mxu0 %v258
    %295 = vmatprep.subr.mxu0 0.0
    %296 = vmatpush1.msra.mxu0 %v259
    %297 = vmatprep.subr.mxu0 0.0
    %298 = vmatpush1.msra.mxu0 %v260
    %299 = vmatprep.subr.mxu0 0.0
    %300 = vmatpush1.msra.mxu0 %v261
    %301 = vmatprep.subr.mxu0 0.0
    %302 = vmatpush1.msra.mxu0 %v262
    %303 = vmatprep.subr.mxu0 0.0
    %304 = vmatpush1.msra.mxu0 0.0
    %305 = vmatprep.subr.mxu0 0.0
    %306 = vmatpush1.msra.mxu0 0.0
    %307 = vmatprep.subr.mxu0 0.0
    %308 = vmatpush1.msra.mxu0 0.0
    %309 = vmatprep.subr.mxu0 0.0
    %310 = vmatpush1.msra.mxu0 0.0
    %311 = vmatprep.subr.mxu0 0.0
    %312 = vmatpush1.msra.mxu0 0.0
    %313 = vmatprep.subr.mxu0 0.0
    %314 = vmatpush1.msra.mxu0 0.0
    %315 = vmatprep.subr.mxu0 0.0
    %316 = vmatpush1.msra.mxu0 0.0
    %317 = vmatprep.subr.mxu0 0.0
    %318 = vmatpush1.msra.mxu0 0.0
    %319 = vmatprep.subr.mxu0 0.0
    %320 = vmatpush1.msra.mxu0 0.0
    %321 = vmatprep.subr.mxu0 0.0
    %322 = vmatpush1.msra.mxu0 0.0
    %323 = vmatprep.subr.mxu0 0.0
    %324 = vmatpush1.msra.mxu0 0.0
    %325 = vmatprep.subr.mxu0 0.0
    %326 = vmatpush1.msra.mxu0 0.0
    %327 = vmatprep.subr.mxu0 0.0
    %328 = vmatpush1.msra.mxu0 0.0
    %329 = vmatprep.subr.mxu0 0.0
    %330 = vmatpush1.msra.mxu0 0.0
    %331 = vmatprep.subr.mxu0 0.0
    %332 = vmatpush1.msra.mxu0 0.0
    %333 = vmatprep.subr.mxu0 0.0
    %334 = vmatpush1.msra.mxu0 0.0
    %335 = vmatprep.mubr.f32.mxu0 0.0
    %336 = vmatmul.mubr.f32.gmra.mrb[0].mxu0 %v245
    %v337 = vpop.f32.mrb[0].mxu0
    %v338 = vadd.f32 %v269, %v337
    %v339 = vpop.f32.mrb[0].mxu0
    %340 = vdwg.mxu0
    %v341 = vmul.f32 %v338, 20.0
    %v342 = vmin.f32 %v341, 20.0
    %vm343 = vcmp.gt.f32.partialorder %v341, 20.0
    %v344 = vmul.f32 %v342, 1.442695
    %v345 = vpow.pop %v344
    %v346 = vadd.f32 %v345, 1.0
    %v347 = vlog2.pop %v346
    %v348 = vmul.f32 %v347, 0.6931472
    %v349 = vmul.f32 -0.5, %v345
    %v350 = vadd.f32 %v349, 1.0
    %v351 = vmul.f32 %v350, %v345
    %v352 = vand.u32 2147483647, %v345
    %vm353 = vcmp.lt.f32.partialorder %v352, 0.0004427343
    %v354 = vsel %vm353, %v351, %v348
    %v355 = vmul.f32 %v354, 0.05
    %v356 = vsel %vm343, %v338, %v355
    %s357 = scalar_lea.vmem [#allocation2], 256
    %v358 = vld [vmem:[%s357] sm:$0xff]
    %v359 = vld [vmem:[%s357 + $0x8] sm:$0xff]
    %v360 = vld [vmem:[%s357 + $0x10] sm:$0xff]
    %v361 = vld [vmem:[%s357 + $0x18] sm:$0xff]
    %v362 = vld [vmem:[%s357 + $0x20] sm:$0xff]
    %v363 = vld [vmem:[%s357 + $0x28] sm:$0xff]
    %v364 = vld [vmem:[%s357 + $0x30] sm:$0xff]
    %v365 = vld [vmem:[%s357 + $0x38] sm:$0xff]
    %v366 = vld [vmem:[%s357 + $0x40] sm:$0xff]
    %v367 = vld [vmem:[%s357 + $0x48] sm:$0xff]
    %v368 = vld [vmem:[%s357 + $0x50] sm:$0xff]
    %v369 = vld [vmem:[%s357 + $0x58] sm:$0xff]
    %v370 = vld [vmem:[%s357 + $0x60] sm:$0xff]
    %v371 = vld [vmem:[%s357 + $0x68] sm:$0xff]
    %v372 = vld [vmem:[%s357 + $0x70] sm:$0xff]
    %v373 = vld [vmem:[%s357 + $0x78] sm:$0xff]
    %s374 = scalar_lea.vmem %s3, 3
    %v375 = vld [vmem:[%s374] sm:$0x1]
    %v377 = vlaneseq
    %v378 = vshrl.u32 %v377, 7
    %v379 = vsub.s32 0, %v378
    %v380 = vrot.slane %v375, %v379
    %382 = vmatprep.subr.mxu0 0.0
    %383 = vmatpush1.msra.mxu0 %v358
    %384 = vmatprep.subr.mxu0 0.0
    %385 = vmatpush1.msra.mxu0 %v359
    %386 = vmatprep.subr.mxu0 0.0
    %387 = vmatpush1.msra.mxu0 %v360
    %388 = vmatprep.subr.mxu0 0.0
    %389 = vmatpush1.msra.mxu0 %v361
    %390 = vmatprep.subr.mxu0 0.0
    %391 = vmatpush1.msra.mxu0 %v362
    %392 = vmatprep.subr.mxu0 0.0
    %393 = vmatpush1.msra.mxu0 %v363
    %394 = vmatprep.subr.mxu0 0.0
    %395 = vmatpush1.msra.mxu0 %v364
    %396 = vmatprep.subr.mxu0 0.0
    %397 = vmatpush1.msra.mxu0 %v365
    %398 = vmatprep.subr.mxu0 0.0
    %399 = vmatpush1.msra.mxu0 %v366
    %400 = vmatprep.subr.mxu0 0.0
    %401 = vmatpush1.msra.mxu0 %v367
    %402 = vmatprep.subr.mxu0 0.0
    %403 = vmatpush1.msra.mxu0 %v368
    %404 = vmatprep.subr.mxu0 0.0
    %405 = vmatpush1.msra.mxu0 %v369
    %406 = vmatprep.subr.mxu0 0.0
    %407 = vmatpush1.msra.mxu0 %v370
    %408 = vmatprep.subr.mxu0 0.0
    %409 = vmatpush1.msra.mxu0 %v371
    %410 = vmatprep.subr.mxu0 0.0
    %411 = vmatpush1.msra.mxu0 %v372
    %412 = vmatprep.subr.mxu0 0.0
    %413 = vmatpush1.msra.mxu0 %v373
    %414 = vmatprep.subr.mxu0 0.0
    %415 = vmatpush1.msra.mxu0 0.0
    %416 = vmatprep.subr.mxu0 0.0
    %417 = vmatpush1.msra.mxu0 0.0
    %418 = vmatprep.subr.mxu0 0.0
    %419 = vmatpush1.msra.mxu0 0.0
    %420 = vmatprep.subr.mxu0 0.0
    %421 = vmatpush1.msra.mxu0 0.0
    %422 = vmatprep.subr.mxu0 0.0
    %423 = vmatpush1.msra.mxu0 0.0
    %424 = vmatprep.subr.mxu0 0.0
    %425 = vmatpush1.msra.mxu0 0.0
    %426 = vmatprep.subr.mxu0 0.0
    %427 = vmatpush1.msra.mxu0 0.0
    %428 = vmatprep.subr.mxu0 0.0
    %429 = vmatpush1.msra.mxu0 0.0
    %430 = vmatprep.subr.mxu0 0.0
    %431 = vmatpush1.msra.mxu0 0.0
    %432 = vmatprep.subr.mxu0 0.0
    %433 = vmatpush1.msra.mxu0 0.0
    %434 = vmatprep.subr.mxu0 0.0
    %435 = vmatpush1.msra.mxu0 0.0
    %436 = vmatprep.subr.mxu0 0.0
    %437 = vmatpush1.msra.mxu0 0.0
    %438 = vmatprep.subr.mxu0 0.0
    %439 = vmatpush1.msra.mxu0 0.0
    %440 = vmatprep.subr.mxu0 0.0
    %441 = vmatpush1.msra.mxu0 0.0
    %442 = vmatprep.subr.mxu0 0.0
    %443 = vmatpush1.msra.mxu0 0.0
    %444 = vmatprep.subr.mxu0 0.0
    %445 = vmatpush1.msra.mxu0 0.0
    %446 = vmatprep.mubr.f32.mxu0 0.0
    %447 = vmatmul.mubr.f32.gmra.mrb[0].mxu0 %v356
    %v448 = vpop.f32.mrb[0].mxu0
    %v449 = vadd.f32 %v380, %v448
    %v450 = vpop.f32.mrb[0].mxu0
    %451 = vdwg.mxu0
    %v452 = vmul.f32 %v449, 20.0
    %v453 = vmin.f32 %v452, 20.0
    %vm454 = vcmp.gt.f32.partialorder %v452, 20.0
    %v455 = vmul.f32 %v453, 1.442695
    %v456 = vpow.pop %v455
    %v457 = vadd.f32 %v456, 1.0
    %v458 = vlog2.pop %v457
    %v459 = vmul.f32 %v458, 0.6931472
    %v460 = vmul.f32 -0.5, %v456
    %v461 = vadd.f32 %v460, 1.0
    %v462 = vmul.f32 %v461, %v456
    %v463 = vand.u32 2147483647, %v456
    %vm464 = vcmp.lt.f32.partialorder %v463, 0.0004427343
    %v465 = vsel %vm464, %v462, %v459
    %v466 = vmul.f32 %v465, 0.05
    %v467 = vsel %vm454, %v449, %v466
    %v468 = vld [vmem:[%s4] sm:$0xff]
    %v469 = vld [vmem:[%s4 + $0x8] sm:$0xff]
    %v470 = vld [vmem:[%s4 + $0x10] sm:$0xff]
    %v471 = vld [vmem:[%s4 + $0x18] sm:$0xff]
    %v472 = vld [vmem:[%s4 + $0x20] sm:$0xff]
    %v473 = vld [vmem:[%s4 + $0x28] sm:$0xff]
    %v474 = vld [vmem:[%s4 + $0x30] sm:$0xff]
    %v475 = vld [vmem:[%s4 + $0x38] sm:$0xff]
    %v476 = vld [vmem:[%s4 + $0x40] sm:$0xff]
    %v477 = vld [vmem:[%s4 + $0x48] sm:$0xff]
    %v478 = vld [vmem:[%s4 + $0x50] sm:$0xff]
    %v479 = vld [vmem:[%s4 + $0x58] sm:$0xff]
    %v480 = vld [vmem:[%s4 + $0x60] sm:$0xff]
    %v481 = vld [vmem:[%s4 + $0x68] sm:$0xff]
    %v482 = vld [vmem:[%s4 + $0x70] sm:$0xff]
    %v483 = vld [vmem:[%s4 + $0x78] sm:$0xff]
    %v484 = vld [vmem:[%s5] sm:$0x1]
    %v486 = vlaneseq
    %v487 = vshrl.u32 %v486, 7
    %v488 = vsub.s32 0, %v487
    %v489 = vrot.slane %v484, %v488
    %491 = vmatprep.subr.mxu0 0.0
    %492 = vmatpush1.msra.mxu0 %v468
    %493 = vmatprep.subr.mxu0 0.0
    %494 = vmatpush1.msra.mxu0 %v469
    %495 = vmatprep.subr.mxu0 0.0
    %496 = vmatpush1.msra.mxu0 %v470
    %497 = vmatprep.subr.mxu0 0.0
    %498 = vmatpush1.msra.mxu0 %v471
    %499 = vmatprep.subr.mxu0 0.0
    %500 = vmatpush1.msra.mxu0 %v472
    %501 = vmatprep.subr.mxu0 0.0
    %502 = vmatpush1.msra.mxu0 %v473
    %503 = vmatprep.subr.mxu0 0.0
    %504 = vmatpush1.msra.mxu0 %v474
    %505 = vmatprep.subr.mxu0 0.0
    %506 = vmatpush1.msra.mxu0 %v475
    %507 = vmatprep.subr.mxu0 0.0
    %508 = vmatpush1.msra.mxu0 %v476
    %509 = vmatprep.subr.mxu0 0.0
    %510 = vmatpush1.msra.mxu0 %v477
    %511 = vmatprep.subr.mxu0 0.0
    %512 = vmatpush1.msra.mxu0 %v478
    %513 = vmatprep.subr.mxu0 0.0
    %514 = vmatpush1.msra.mxu0 %v479
    %515 = vmatprep.subr.mxu0 0.0
    %516 = vmatpush1.msra.mxu0 %v480
    %517 = vmatprep.subr.mxu0 0.0
    %518 = vmatpush1.msra.mxu0 %v481
    %519 = vmatprep.subr.mxu0 0.0
    %520 = vmatpush1.msra.mxu0 %v482
    %521 = vmatprep.subr.mxu0 0.0
    %522 = vmatpush1.msra.mxu0 %v483
    %523 = vmatprep.subr.mxu0 0.0
    %524 = vmatpush1.msra.mxu0 0.0
    %525 = vmatprep.subr.mxu0 0.0
    %526 = vmatpush1.msra.mxu0 0.0
    %527 = vmatprep.subr.mxu0 0.0
    %528 = vmatpush1.msra.mxu0 0.0
    %529 = vmatprep.subr.mxu0 0.0
    %530 = vmatpush1.msra.mxu0 0.0
    %531 = vmatprep.subr.mxu0 0.0
    %532 = vmatpush1.msra.mxu0 0.0
    %533 = vmatprep.subr.mxu0 0.0
    %534 = vmatpush1.msra.mxu0 0.0
    %535 = vmatprep.subr.mxu0 0.0
    %536 = vmatpush1.msra.mxu0 0.0
    %537 = vmatprep.subr.mxu0 0.0
    %538 = vmatpush1.msra.mxu0 0.0
    %539 = vmatprep.subr.mxu0 0.0
    %540 = vmatpush1.msra.mxu0 0.0
    %541 = vmatprep.subr.mxu0 0.0
    %542 = vmatpush1.msra.mxu0 0.0
    %543 = vmatprep.subr.mxu0 0.0
    %544 = vmatpush1.msra.mxu0 0.0
    %545 = vmatprep.subr.mxu0 0.0
    %546 = vmatpush1.msra.mxu0 0.0
    %547 = vmatprep.subr.mxu0 0.0
    %548 = vmatpush1.msra.mxu0 0.0
    %549 = vmatprep.subr.mxu0 0.0
    %550 = vmatpush1.msra.mxu0 0.0
    %551 = vmatprep.subr.mxu0 0.0
    %552 = vmatpush1.msra.mxu0 0.0
    %553 = vmatprep.subr.mxu0 0.0
    %554 = vmatpush1.msra.mxu0 0.0
    %555 = vmatprep.mubr.f32.mxu0 0.0
    %556 = vmatmul.mubr.f32.gmra.mrb[0].mxu0 %v467
    %v557 = vpop.f32.mrb[0].mxu0
    %v558 = vadd.f32 %v489, %v557
    %v559 = vpop.f32.mrb[0].mxu0
    %560 = vdwg.mxu0
    %561 = vst.msk [vmem:[%s6] sm:$0xff] %vm46, %v558
    // Predicated region
    $region30: #{_ncl_forward_padded.1} parent=1 // pred_check
      _
    $region31: #{_ncl_forward_padded.1} parent=1 // pred_check_branch
      %563 = sbr.rel (0) target = $region33
    $region32: #{_ncl_forward_padded.1} parent=1 // pred_region
      _
    $region33: #{_ncl_forward_padded.1} parent=1 // pred_fallthru
      _
    // Predicated region
    $region34: #{_ncl_forward_padded.1} parent=1 // pred_check
      _
    $region35: #{_ncl_forward_padded.1} parent=1 // pred_check_branch
      %565 = sbr.rel (0) target = $region37
    $region36: #{_ncl_forward_padded.1} parent=1 // pred_region
      _
    $region37: #{_ncl_forward_padded.1} parent=1 // pred_fallthru
      _
    %566 = vsyncpa [#allocation3], 1

</llo_original>
